<compile_context>
chip_gen: v7x
topology: tpu7x:2x2x1
jax: 0.10.0
libtpu: 0.0.40
codegen_flags: <defaults>
</compile_context>

<pallas_src>
import functools

import jax
import jax.numpy as jnp
from jax import lax
from jax.experimental import pallas as pl
from jax.experimental.pallas import tpu as pltpu


def _round_up(x, m):
    return (x + m - 1) // m * m


def _stacked_taps(x2d, K, seq_len):
    """Stack the K same-padded conv taps along the lane (channel) axis.

    x2d: (R, C) channels-last rows, R = batch_tile * seq_len, any dtype.
    Returns (R, K*C) where lanes [k*C:(k+1)*C] of row r hold x2d[r + k - K//2]
    if that source row belongs to the same batch element, else 0.
    Shifts use pltpu.roll (XLU) + an iota mask: no per-tap concat-with-zeros
    copies, and taps stay in the input (compute) dtype.
    """
    R, C = x2d.shape
    p = K // 2
    if K == 1:
        return x2d
    pos = lax.broadcasted_iota(jnp.int32, (R, C), 0) % seq_len  # pos within element
    zero = jnp.zeros((), x2d.dtype)
    taps = []
    for k in range(K):
        d = k - p
        if d == 0:
            taps.append(x2d)
        else:
            shifted = pltpu.roll(x2d, shift=(-d) % R, axis=0)
            valid = (pos + d >= 0) & (pos + d < seq_len)
            taps.append(jnp.where(valid, shifted, zero))
    return jnp.concatenate(taps, axis=-1)


def _tile_stats(y, cout):
    """Per-tile centered statistics: row 0 = sum, row 1 = centered M2."""
    rows = y.shape[0]
    s = jnp.sum(y, axis=0, keepdims=True)
    c = y - s * (1.0 / rows)
    m2 = jnp.sum(c * c, axis=0, keepdims=True)
    pad = jnp.zeros((6, cout), jnp.float32)
    return jnp.concatenate([s, m2, pad], axis=0).reshape(1, 8, cout)


def _conv_stats_kernel(x_ref, w_ref, y_ref, stats_ref, *, K, seq_len, build_taps):
    """conv1 as a single stacked-tap MXU matmul + per-tile BN statistics."""
    tn, lo, cout = y_ref.shape
    rows = tn * lo
    x2d = x_ref[...].reshape(rows, x_ref.shape[2])
    lhs = _stacked_taps(x2d, K, seq_len) if build_taps else x2d
    y = jnp.dot(lhs, w_ref[...], preferred_element_type=jnp.float32)
    y_ref[...] = y.reshape(tn, lo, cout).astype(y_ref.dtype)
    stats_ref[...] = _tile_stats(y, cout)


def _bn_conv_stats_kernel(y1_ref, sc_ref, sh_ref, w_ref, y2_ref, stats_ref, *,
                          K, seq_len, compute_dtype):
    """Folded BN1 affine + ReLU, conv2 (stacked-tap matmul), per-tile BN2 stats."""
    tn, lo, cout = y2_ref.shape
    rows = tn * lo
    y1 = y1_ref[...].reshape(rows, y1_ref.shape[2])
    h = jnp.maximum(y1 * sc_ref[...] + sh_ref[...], 0.0).astype(compute_dtype)
    lhs = _stacked_taps(h, K, seq_len)
    y2 = jnp.dot(lhs, w_ref[...], preferred_element_type=jnp.float32)
    y2_ref[...] = y2.reshape(tn, lo, cout).astype(y2_ref.dtype)
    stats_ref[...] = _tile_stats(y2, cout)


def _bn_residual_kernel(*refs, has_downsample):
    """Folded BN2 affine + ReLU, residual add (optional 1x1 downsample), ReLU."""
    if has_downsample:
        y2_ref, sc_ref, sh_ref, xs_ref, wd_ref, bd_ref, out_ref = refs
    else:
        y2_ref, sc_ref, sh_ref, xs_ref, out_ref = refs
    tn, lo, cout = out_ref.shape
    rows = tn * lo
    y2 = y2_ref[...].reshape(rows, cout)
    h = jnp.maximum(y2 * sc_ref[...] + sh_ref[...], 0.0)
    if has_downsample:
        xs = xs_ref[...].reshape(rows, xs_ref.shape[2])
        ident = jnp.dot(xs, wd_ref[...], preferred_element_type=jnp.float32) + bd_ref[...]
    else:
        # Residual read stays f32: no bf16 rounding on the skip path.
        ident = xs_ref[...].reshape(rows, cout).astype(jnp.float32)
    out_ref[...] = jnp.maximum(h + ident, 0.0).reshape(tn, lo, cout).astype(out_ref.dtype)


def _fold_bn(stats, gamma, beta, rows_per_tile, total_rows, eps):
    """Combine per-tile (sum, centered M2) into folded BN scale/shift (Chan combine)."""
    s = stats[:, 0, :]                      # (tiles, C)
    m2 = stats[:, 1, :]
    mean = jnp.sum(s, axis=0) / total_rows
    tile_mean = s / rows_per_tile
    m2_total = jnp.sum(m2, axis=0) + rows_per_tile * jnp.sum((tile_mean - mean) ** 2, axis=0)
    var = m2_total / total_rows             # biased variance (training-mode BN)
    scale = gamma * lax.rsqrt(var + eps)
    shift = beta - mean * scale
    return scale.reshape(1, -1), shift.reshape(1, -1)


def basic_block_forward(x_ncl, params, *, kernel_size=3, stride=1,
                        compute_dtype=jnp.bfloat16, batch_tile=1, eps=1e-5):
    """x_ncl: (N, Cin, L) float32, PyTorch NCL layout. Returns (N, Cout, Lo) f32."""
    N, Cin, L = x_ncl.shape
    K = kernel_size
    p = K // 2
    w1 = params['conv1_w']                                   # (Cout, Cin, K)
    Cout = w1.shape[0]
    Lo = (L + 2 * p - K) // stride + 1
    has_downsample = (stride != 1) or (Cin != Cout)

    lane = 128
    Cin_p, Cout_p = _round_up(Cin, lane), _round_up(Cout, lane)

    tn = batch_tile if (batch_tile > 0 and N % batch_tile == 0) else 1
    num_tiles = N // tn
    rows_per_tile = tn * Lo
    total_rows = N * Lo

    # ---- wrapper-side layout prep (XLA): NCL -> NLC, lane padding ----
    x_nlc = jnp.transpose(x_ncl, (0, 2, 1))
    x_p = jnp.pad(x_nlc, ((0, 0), (0, 0), (0, Cin_p - Cin)))

    def stack_weight(w, cin, cin_p):                         # (Cout, cin, K) -> (K*cin_p, Cout_p)
        wk = jnp.transpose(w, (2, 1, 0))                     # (K, cin, Cout)
        wk = jnp.pad(wk, ((0, 0), (0, cin_p - cin), (0, Cout_p - Cout)))
        return wk.reshape(w.shape[2] * cin_p, Cout_p).astype(compute_dtype)

    w1s = stack_weight(w1, Cin, Cin_p)
    w2s = stack_weight(params['conv2_w'], Cout, Cout_p)
    g1 = jnp.pad(params['bn1_g'], (0, Cout_p - Cout)).astype(jnp.float32)
    b1 = jnp.pad(params['bn1_b'], (0, Cout_p - Cout)).astype(jnp.float32)
    g2 = jnp.pad(params['bn2_g'], (0, Cout_p - Cout)).astype(jnp.float32)
    b2 = jnp.pad(params['bn2_b'], (0, Cout_p - Cout)).astype(jnp.float32)
    # conv1/conv2 biases are intentionally NOT passed: training-mode BN subtracts
    # the batch mean, so a per-channel bias before BN has no numerical effect.

    if stride == 1:
        x1_in = x_p.astype(compute_dtype)                    # taps built in-kernel (roll + mask)
        build_taps = True
    else:
        # stride > 1: strided per-tap gather at the XLA level; the kernel sees a
        # pre-stacked (N, Lo, K*Cin_p) operand and runs one matmul.
        xp = jnp.pad(x_p, ((0, 0), (p, p), (0, 0)))
        taps = [xp[:, k:k + (Lo - 1) * stride + 1:stride, :] for k in range(K)]
        x1_in = jnp.concatenate(taps, axis=-1).astype(compute_dtype)
        build_taps = False

    cparams = pltpu.CompilerParams(dimension_semantics=("parallel",))
    # TODO(synk): for very long L, additionally tile the length axis (with a K//2
    # halo) and size tiles per generation: keep the double-buffered working set
    # under ~48 MiB on v7x (64 MiB VMEM); v5e/v6e can take ~2x larger tiles.

    def vec_spec(cols):
        return pl.BlockSpec((1, cols), lambda i: (0, 0))     # resident per-channel vectors

    stats_shape = jax.ShapeDtypeStruct((num_tiles, 8, Cout_p), jnp.float32)
    stats_spec = pl.BlockSpec((1, 8, Cout_p), lambda i: (i, 0, 0))
    act_spec = pl.BlockSpec((tn, Lo, Cout_p), lambda i: (i, 0, 0))

    # ---- pass 1: conv1 -> y1 (+ per-tile BN1 stats) ----
    y1, st1 = pl.pallas_call(
        functools.partial(_conv_stats_kernel, K=K, seq_len=Lo, build_taps=build_taps),
        grid=(num_tiles,),
        in_specs=[pl.BlockSpec((tn, x1_in.shape[1], x1_in.shape[2]), lambda i: (i, 0, 0)),
                  pl.BlockSpec(w1s.shape, lambda i: (0, 0))],
        out_specs=(act_spec, stats_spec),
        out_shape=(jax.ShapeDtypeStruct((N, Lo, Cout_p), jnp.float32), stats_shape),
        compiler_params=cparams,
    )(x1_in, w1s)
    sc1, sh1 = _fold_bn(st1, g1, b1, rows_per_tile, total_rows, eps)

    # ---- pass 2: BN1 affine + ReLU + conv2 -> y2 (+ per-tile BN2 stats) ----
    y2, st2 = pl.pallas_call(
        functools.partial(_bn_conv_stats_kernel, K=K, seq_len=Lo, compute_dtype=compute_dtype),
        grid=(num_tiles,),
        in_specs=[act_spec, vec_spec(Cout_p), vec_spec(Cout_p),
                  pl.BlockSpec(w2s.shape, lambda i: (0, 0))],
        out_specs=(act_spec, stats_spec),
        out_shape=(jax.ShapeDtypeStruct((N, Lo, Cout_p), jnp.float32), stats_shape),
        compiler_params=cparams,
    )(y1, sc1, sh1, w2s)
    sc2, sh2 = _fold_bn(st2, g2, b2, rows_per_tile, total_rows, eps)

    # ---- pass 3: BN2 affine + ReLU + residual + ReLU ----
    if has_downsample:
        xs = x_p[:, ::stride, :].astype(compute_dtype)       # (N, Lo, Cin_p)
        wd = jnp.pad(jnp.transpose(params['down_w'][:, :, 0], (1, 0)),
                     ((0, Cin_p - Cin), (0, Cout_p - Cout))).astype(compute_dtype)
        bd = jnp.pad(params['down_b'], (0, Cout_p - Cout)).astype(jnp.float32).reshape(1, Cout_p)
        extra_in = [xs, wd, bd]
        extra_specs = [pl.BlockSpec((tn, Lo, Cin_p), lambda i: (i, 0, 0)),
                       pl.BlockSpec(wd.shape, lambda i: (0, 0)),
                       vec_spec(Cout_p)]
    else:
        xs = x_p.astype(jnp.float32)                         # f32 skip path (Cin_p == Cout_p)
        extra_in = [xs]
        extra_specs = [act_spec]

    out_p = pl.pallas_call(
        functools.partial(_bn_residual_kernel, has_downsample=has_downsample),
        grid=(num_tiles,),
        in_specs=[act_spec, vec_spec(Cout_p), vec_spec(Cout_p)] + extra_specs,
        out_specs=act_spec,
        out_shape=jax.ShapeDtypeStruct((N, Lo, Cout_p), jnp.float32),
        compiler_params=cparams,
    )(y2, sc2, sh2, *extra_in)

    return jnp.transpose(out_p[:, :, :Cout], (0, 2, 1))


def reference_forward(x, params, *, stride=1, eps=1e-5):
    """Pure-JAX reference mirroring the PyTorch module (training-mode BN)."""
    def conv(x, w, b, s, pad):
        y = lax.conv_general_dilated(
            x, w, window_strides=(s,), padding=[(pad, pad)],
            dimension_numbers=('NCH', 'OIH', 'NCH'),
            precision=lax.Precision.HIGHEST)
        return y + b[None, :, None]

    def bn(y, g, be):
        mean = y.mean(axis=(0, 2), keepdims=True)
        var = ((y - mean) ** 2).mean(axis=(0, 2), keepdims=True)
        return (y - mean) / jnp.sqrt(var + eps) * g[None, :, None] + be[None, :, None]

    Cin = x.shape[1]
    Cout = params['conv1_w'].shape[0]
    K = params['conv1_w'].shape[2]
    if stride != 1 or Cin != Cout:
        ident = conv(x, params['down_w'], params['down_b'], stride, 0)
    else:
        ident = x
    h = jax.nn.relu(bn(conv(x, params['conv1_w'], params['conv1_b'], stride, K // 2),
                       params['bn1_g'], params['bn1_b']))
    h = jax.nn.relu(bn(conv(h, params['conv2_w'], params['conv2_b'], 1, K // 2),
                       params['bn2_g'], params['bn2_b']))
    return jax.nn.relu(h + ident)


def _make_params(key, cin, cout, k, with_down):
    n = 10 if with_down else 8
    keys = jax.random.split(key, n)
    p = {
        'conv1_w': 0.3 * jax.random.normal(keys[0], (cout, cin, k), jnp.float32),
        'conv1_b': 0.1 * jax.random.normal(keys[1], (cout,), jnp.float32),
        'bn1_g': 1.0 + 0.1 * jax.random.normal(keys[2], (cout,), jnp.float32),
        'bn1_b': 0.1 * jax.random.normal(keys[3], (cout,), jnp.float32),
        'conv2_w': 0.3 * jax.random.normal(keys[4], (cout, cout, k), jnp.float32),
        'conv2_b': 0.1 * jax.random.normal(keys[5], (cout,), jnp.float32),
        'bn2_g': 1.0 + 0.1 * jax.random.normal(keys[6], (cout,), jnp.float32),
        'bn2_b': 0.1 * jax.random.normal(keys[7], (cout,), jnp.float32),
    }
    if with_down:
        p['down_w'] = 0.3 * jax.random.normal(keys[8], (cout, cin, 1), jnp.float32)
        p['down_b'] = 0.1 * jax.random.normal(keys[9], (cout,), jnp.float32)
    return p


if __name__ == "__main__":
    key = jax.random.PRNGKey(0)
    kA, kB, kC, kx1, kx2, kx3 = jax.random.split(key, 6)

    N, Cin, Cout, L, K = 2, 4, 8, 16, 3

    # Case A: Cin != Cout -> 1x1-conv downsample path (stride 1), f32 and bf16.
    pA = _make_params(kA, Cin, Cout, K, with_down=True)
    xA = jax.random.normal(kx1, (N, Cin, L), jnp.float32)     # PyTorch (N, C, L)
    refA = reference_forward(xA, pA, stride=1)

    outA = jax.block_until_ready(
        basic_block_forward(xA, pA, kernel_size=K, stride=1, compute_dtype=jnp.float32))
    assert outA.shape == refA.shape == (N, Cout, L), (outA.shape, refA.shape)
    errA = float(jnp.max(jnp.abs(outA - refA)))
    assert bool(jnp.allclose(outA, refA, atol=1e-3, rtol=1e-3)), f"f32 downsample err {errA}"

    outAb = jax.block_until_ready(
        basic_block_forward(xA, pA, kernel_size=K, stride=1))  # default bf16 MXU operands
    errAb = float(jnp.max(jnp.abs(outAb - refA)))
    assert bool(jnp.allclose(outAb, refA, atol=5e-2, rtol=5e-2)), f"bf16 downsample err {errAb}"

    # Case B: Cin == Cout, stride 1 -> nn.Identity() residual (f32 skip path).
    pB = _make_params(kB, Cout, Cout, K, with_down=False)
    xB = jax.random.normal(kx2, (N, Cout, L), jnp.float32)
    outB = jax.block_until_ready(
        basic_block_forward(xB, pB, kernel_size=K, stride=1, compute_dtype=jnp.float32))
    refB = reference_forward(xB, pB, stride=1)
    assert outB.shape == refB.shape == (N, Cout, L), (outB.shape, refB.shape)
    errB = float(jnp.max(jnp.abs(outB - refB)))
    assert bool(jnp.allclose(outB, refB, atol=1e-3, rtol=1e-3)), f"f32 identity err {errB}"

    # Case C: stride=2 -> strided conv1 (pre-stacked taps) + strided 1x1 downsample.
    pC = _make_params(kC, Cin, Cout, K, with_down=True)
    xC = jax.random.normal(kx3, (N, Cin, L), jnp.float32)
    outC = jax.block_until_ready(
        basic_block_forward(xC, pC, kernel_size=K, stride=2, compute_dtype=jnp.float32))
    refC = reference_forward(xC, pC, stride=2)
    assert outC.shape == refC.shape == (N, Cout, L // 2), (outC.shape, refC.shape)
    errC = float(jnp.max(jnp.abs(outC - refC)))
    assert bool(jnp.allclose(outC, refC, atol=1e-3, rtol=1e-3)), f"f32 stride-2 err {errC}"

    print("KERNEL_OK")
</pallas_src>

<mosaic_0001>
module attributes {stable_mosaic.version = 11 : i64} {
  func.func @_conv_stats_kernel(%arg0: i32, %arg1: memref<1x16x128xf32, #tpu.memory_space<vmem>>, %arg2: memref<384x128xf32, #tpu.memory_space<vmem>>, %arg3: memref<1x16x128xf32, #tpu.memory_space<vmem>>, %arg4: memref<1x8x128xf32, #tpu.memory_space<vmem>>) attributes {dimension_semantics = [#tpu.dimension_semantics<parallel>], iteration_bounds = array<i64: 2>, scalar_prefetch = 0 : i64, scratch_operands = 0 : i64, tpu.core_type = #tpu.core_type<tc>, window_params = [{transform_indices = @transform_0, window_bounds = array<i64: 1, 16, 128>}, {pipeline_mode = #tpu.pipeline_mode<synchronous>, transform_indices = @transform_1, window_bounds = array<i64: 384, 128>}, {transform_indices = @transform_2, window_bounds = array<i64: 1, 16, 128>}, {transform_indices = @transform_3, window_bounds = array<i64: 1, 8, 128>}]} {
    %c0 = arith.constant 0 : index
    %c0_0 = arith.constant 0 : index
    %c0_1 = arith.constant 0 : index
    %0 = vector.load %arg1[%c0, %c0_0, %c0_1] : memref<1x16x128xf32, #tpu.memory_space<vmem>>, vector<1x16x128xf32>
    %1 = vector.shape_cast %0 : vector<1x16x128xf32> to vector<16x128xf32>
    %2 = tpu.iota {dimensions = array<i32: 0>} : vector<16x128xi32>
    %c16_i32 = arith.constant 16 : i32
    %c0_i32 = arith.constant 0 : i32
    %3 = arith.cmpi eq, %c16_i32, %c0_i32 : i32
    %c1_i32 = arith.constant 1 : i32
    %4 = arith.select %3, %c1_i32, %c16_i32 : i32
    %5 = vector.broadcast %4 : i32 to vector<16x128xi32>
    %6 = arith.remsi %2, %5 : vector<16x128xi32>
    %c0_i32_2 = arith.constant 0 : i32
    %7 = vector.broadcast %c0_i32_2 : i32 to vector<16x128xi32>
    %8 = arith.cmpi ne, %6, %7 : vector<16x128xi32>
    %c0_i32_3 = arith.constant 0 : i32
    %9 = vector.broadcast %c0_i32_3 : i32 to vector<16x128xi32>
    %10 = arith.cmpi slt, %6, %9 : vector<16x128xi32>
    %c0_i32_4 = arith.constant 0 : i32
    %11 = arith.cmpi slt, %4, %c0_i32_4 : i32
    %12 = vector.broadcast %11 : i1 to vector<16x128xi1>
    %13 = vector.broadcast %12 : vector<16x128xi1> to vector<16x128xi1>
    %14 = arith.xori %10, %13 : vector<16x128xi1>
    %15 = arith.andi %14, %8 : vector<16x128xi1>
    %16 = vector.broadcast %4 : i32 to vector<16x128xi32>
    %17 = arith.addi %6, %16 : vector<16x128xi32>
    %18 = arith.select %15, %17, %6 : vector<16x128xi1>, vector<16x128xi32>
    %c1_i32_5 = arith.constant 1 : i32
    %19 = tpu.dynamic_rotate %1 by %c1_i32_5 dim 0 : vector<16x128xf32>, i32 -> vector<16x128xf32>
    %c-1_i32 = arith.constant -1 : i32
    %20 = vector.broadcast %c-1_i32 : i32 to vector<16x128xi32>
    %21 = arith.addi %18, %20 : vector<16x128xi32>
    %c0_i32_6 = arith.constant 0 : i32
    %22 = vector.broadcast %c0_i32_6 : i32 to vector<16x128xi32>
    %23 = arith.cmpi sge, %21, %22 : vector<16x128xi32>
    %c-1_i32_7 = arith.constant -1 : i32
    %24 = vector.broadcast %c-1_i32_7 : i32 to vector<16x128xi32>
    %25 = arith.addi %18, %24 : vector<16x128xi32>
    %c16_i32_8 = arith.constant 16 : i32
    %26 = vector.broadcast %c16_i32_8 : i32 to vector<16x128xi32>
    %27 = arith.cmpi slt, %25, %26 : vector<16x128xi32>
    %28 = arith.andi %23, %27 : vector<16x128xi1>
    %cst = arith.constant 0.000000e+00 : f32
    %29 = vector.broadcast %cst : f32 to vector<16x128xf32>
    %30 = arith.select %28, %19, %29 : vector<16x128xi1>, vector<16x128xf32>
    %c15_i32 = arith.constant 15 : i32
    %31 = tpu.dynamic_rotate %1 by %c15_i32 dim 0 : vector<16x128xf32>, i32 -> vector<16x128xf32>
    %c1_i32_9 = arith.constant 1 : i32
    %32 = vector.broadcast %c1_i32_9 : i32 to vector<16x128xi32>
    %33 = arith.addi %18, %32 : vector<16x128xi32>
    %c0_i32_10 = arith.constant 0 : i32
    %34 = vector.broadcast %c0_i32_10 : i32 to vector<16x128xi32>
    %35 = arith.cmpi sge, %33, %34 : vector<16x128xi32>
    %c1_i32_11 = arith.constant 1 : i32
    %36 = vector.broadcast %c1_i32_11 : i32 to vector<16x128xi32>
    %37 = arith.addi %18, %36 : vector<16x128xi32>
    %c16_i32_12 = arith.constant 16 : i32
    %38 = vector.broadcast %c16_i32_12 : i32 to vector<16x128xi32>
    %39 = arith.cmpi slt, %37, %38 : vector<16x128xi32>
    %40 = arith.andi %35, %39 : vector<16x128xi1>
    %cst_13 = arith.constant 0.000000e+00 : f32
    %41 = vector.broadcast %cst_13 : f32 to vector<16x128xf32>
    %42 = arith.select %40, %31, %41 : vector<16x128xi1>, vector<16x128xf32>
    %43 = tpu.concatenate %30, %1, %42 in 1 : vector<16x128xf32>, vector<16x128xf32>, vector<16x128xf32> -> vector<16x384xf32>
    %c0_14 = arith.constant 0 : index
    %c0_15 = arith.constant 0 : index
    %44 = vector.load %arg2[%c0_14, %c0_15] : memref<384x128xf32, #tpu.memory_space<vmem>>, vector<384x128xf32>
    %cst_16 = arith.constant dense<0.000000e+00> : vector<16x128xf32>
    %45 = tpu.matmul %43, %44, %cst_16 {dimension_numbers = #tpu.dot_dimension_numbers<[1], [0], [0], [1], [0, 0, 1, 1], [], []>} : vector<16x384xf32>, vector<384x128xf32>, vector<16x128xf32> -> vector<16x128xf32>
    %46 = vector.shape_cast %45 : vector<16x128xf32> to vector<1x16x128xf32>
    %c0_17 = arith.constant 0 : index
    %c0_18 = arith.constant 0 : index
    %c0_19 = arith.constant 0 : index
    %47 = vector.load %arg3[%c0_17, %c0_18, %c0_19] : memref<1x16x128xf32, #tpu.memory_space<vmem>>, vector<1x16x128xf32>
    tpu.vector_store %arg3[%c0_17, %c0_18, %c0_19], %46 {strides = array<i32>} : memref<1x16x128xf32, #tpu.memory_space<vmem>>, vector<1x16x128xf32>,
    %cst_20 = arith.constant dense<0.000000e+00> : vector<128xf32>
    %48 = vector.multi_reduction <add>, %45, %cst_20 [0] : vector<16x128xf32> to vector<128xf32>
    %49 = vector.shape_cast %48 : vector<128xf32> to vector<1x128xf32>
    %cst_21 = arith.constant 6.250000e-02 : f32
    %50 = vector.broadcast %cst_21 : f32 to vector<1x128xf32>
    %51 = arith.mulf %49, %50 : vector<1x128xf32>
    %52 = vector.broadcast %51 : vector<1x128xf32> to vector<16x128xf32>
    %53 = arith.subf %45, %52 : vector<16x128xf32>
    %54 = arith.mulf %53, %53 : vector<16x128xf32>
    %cst_22 = arith.constant dense<0.000000e+00> : vector<128xf32>
    %55 = vector.multi_reduction <add>, %54, %cst_22 [0] : vector<16x128xf32> to vector<128xf32>
    %56 = vector.shape_cast %55 : vector<128xf32> to vector<1x128xf32>
    %cst_23 = arith.constant 0.000000e+00 : f32
    %57 = vector.broadcast %cst_23 : f32 to vector<6x128xf32>
    %58 = tpu.concatenate %49, %56, %57 in 0 : vector<1x128xf32>, vector<1x128xf32>, vector<6x128xf32> -> vector<8x128xf32>
    %59 = vector.shape_cast %58 : vector<8x128xf32> to vector<1x8x128xf32>
    %c0_24 = arith.constant 0 : index
    %c0_25 = arith.constant 0 : index
    %c0_26 = arith.constant 0 : index
    %60 = vector.load %arg4[%c0_24, %c0_25, %c0_26] : memref<1x8x128xf32, #tpu.memory_space<vmem>>, vector<1x8x128xf32>
    tpu.vector_store %arg4[%c0_24, %c0_25, %c0_26], %59 {strides = array<i32>} : memref<1x8x128xf32, #tpu.memory_space<vmem>>, vector<1x8x128xf32>,
    return
  }
  func.func @transform_0(%arg0: i32) -> (i32, i32, i32) {
    %c0_i32 = arith.constant 0 : i32
    %c0_i32_0 = arith.constant 0 : i32
    %c0_i32_1 = arith.constant 0 : i32
    return %arg0, %c0_i32, %c0_i32_0 : i32, i32, i32
  }
  func.func @transform_1(%arg0: i32) -> (i32, i32) {
    %c0_i32 = arith.constant 0 : i32
    %c0_i32_0 = arith.constant 0 : i32
    %c0_i32_1 = arith.constant 0 : i32
    return %c0_i32, %c0_i32_0 : i32, i32
  }
  func.func @transform_2(%arg0: i32) -> (i32, i32, i32) {
    %c0_i32 = arith.constant 0 : i32
    %c0_i32_0 = arith.constant 0 : i32
    %c0_i32_1 = arith.constant 0 : i32
    return %arg0, %c0_i32, %c0_i32_0 : i32, i32, i32
  }
  func.func @transform_3(%arg0: i32) -> (i32, i32, i32) {
    %c0_i32 = arith.constant 0 : i32
    %c0_i32_0 = arith.constant 0 : i32
    %c0_i32_1 = arith.constant 0 : i32
    return %arg0, %c0_i32, %c0_i32_0 : i32, i32, i32
  }
}

</mosaic_0001>

<llo_original>
// kernel: tpu_custom_call.1
$region0: #{tpu_custom_call.1}
  #allocation0 [shape = 'u32[]', space=smem, size = 0x4, offset = 0x4, fixed_abs, tag = 'smem constant byte address 0x4 - core index']
  #allocation1 [shape = 'u32[144,128]{1,0:T(1,128)}', space=vmem, size = 0x12000, scoped, tag = 'internal scratch']
  %s0 = inlined_call_operand.hbm [shape: f32[2,16,128], index: 0, kind: input, shape index: {}]
  %s1 = inlined_call_operand.hbm [shape: f32[384,128], index: 1, kind: input, shape index: {}]
  %s2 = inlined_call_operand.hbm [shape: f32[2,16,128], index: 2, kind: output, shape index: {0}]
  %s3 = inlined_call_operand.hbm [shape: f32[2,8,128], index: 3, kind: output, shape index: {1}]
  %4 = xla_tuple %s2, %s3
  %s5 = sld [smem:[#allocation0]]
  $region57: #{tpu_custom_call.1} parent=0
    _
  %s7 = ssub.s32 1, %s5
  %s8 = scalar_select 0, %s7, %s5
  $region1: #{tpu_custom_call.1} parent=0
    #allocation2 [shape = 'u8[16384]{0}', space=vmem, size = 0x4000, scoped, tag = 'input window, operand 0']
    #allocation3 [shape = 's32[2]{0}', space=sflag, size = 0x8, scoped, tag = 'scoped memory for tpu_custom_call.1']
    #allocation4 [shape = 's32[2]{0}', space=sflag, size = 0x8, scoped, tag = 'scoped memory for tpu_custom_call.1']
    #allocation5 [shape = 'u8[196608]{0}', space=vmem, size = 0x30000, scoped, tag = 'input window, operand 1, single buffered']
    #allocation6 [shape = 's32[1]{0}', space=sflag, size = 0x4, scoped, tag = 'scoped memory for tpu_custom_call.1']
    #allocation7 [shape = 'u8[16384]{0}', space=vmem, size = 0x4000, scoped, tag = 'output window, operand 0']
    #allocation8 [shape = 'u8[8192]{0}', space=vmem, size = 0x2000, scoped, tag = 'output window, operand 1']
    #allocation9 [shape = 's32[2]{0}', space=sflag, size = 0x8, scoped, tag = 'scoped memory for tpu_custom_call.1']
    %9 = vsyncpa [#allocation3], 0
    %s10 = scalar_lea.sflag [#allocation3], 1
    %11 = vsyncpa %s10, 0
    %12 = vsyncpa [#allocation6], 0
    %13 = vsyncpa [#allocation4], 0
    %s14 = scalar_lea.sflag [#allocation4], 1
    %15 = vsyncpa %s14, 0
    %16 = vsyncpa [#allocation9], 0
    %s17 = scalar_lea.sflag [#allocation9], 1
    %18 = vsyncpa %s17, 0
    loop: start=0, step=1, limit=4
    $region2: #{tpu_custom_call.1} parent=1 // loop_pre_header
      _
    $region3: #{tpu_custom_call.1} parent=1 // loop_header
      %s20 = sphi 0, %s24
      %p21 = scmp.ge.s32.totalorder %s20, 4
      %s30 = sphi 0, %s32
      %s33 = sphi 0, %s30
      %s34 = sphi 0, %s33
      %s50 = sphi 0, %s34
      %s54 = sphi 0, %s54
      %s56 = sphi 0, %s54
      %s57 = sphi 0, %s56
      %s71 = sphi 0, %s57
      %s77 = sphi 0, %s79
      %s80 = sphi 0, %s77
      %s81 = sphi 0, %s80
      %s97 = sphi 0, %s81
      %s103 = sphi 0, %s105
      %s106 = sphi 0, %s103
      %s107 = sphi 0, %s106
      %s123 = sphi 0, %s107
    $region4: #{tpu_custom_call.1} parent=1 // loop_header_branch
      %23 = sbr.rel (%p21) target = $region8
    $region5: #{tpu_custom_call.1} parent=1 // loop_body
      %s25 = ssub.s32 %s20, 1
      %s26 = ssub.s32 %s20, 2
      %s27 = sadd.s32 %s20, 1
      %s28 = ssub.s32 %s20, %s27
      %p29 = scmp.eq.s32.totalorder %s28, 0
      %s31 = sadd.s32 %s30, 1
      %s32 = scalar_select %p29, %s30, %s31
      %p35 = pneg %p29
      %p36 = scmp.eq.s32.totalorder %s20, 1
      %p37 = por %p35, %p36
      %p38 = scmp.ne.s32.totalorder %s30, %s33
      %p39 = scmp.eq.s32.totalorder %s20, 0
      %p40 = por %p38, %p39
      %p41 = scmp.ne.s32.totalorder %s30, %s33
      %p42 = scmp.eq.s32.totalorder %s25, 1
      %p43 = por %p41, %p42
      %p44 = scmp.ne.s32.totalorder %s33, %s34
      %p45 = scmp.eq.s32.totalorder %s25, 0
      %p46 = por %p44, %p45
      %p47 = scmp.ne.s32.totalorder %s33, %s34
      %p48 = scmp.eq.s32.totalorder %s26, 1
      %p49 = por %p47, %p48
      %p51 = scmp.ne.s32.totalorder %s34, %s50
      %p52 = scmp.eq.s32.totalorder %s26, 0
      %p53 = por %p51, %p52
      %s55 = sadd.s32 %s54, 1
      %p58 = scmp.eq.s32.totalorder %s20, 1
      %p59 = scmp.ne.s32.totalorder %s54, %s56
      %p60 = scmp.eq.s32.totalorder %s20, 0
      %p61 = por %p59, %p60
      %p62 = scmp.ne.s32.totalorder %s54, %s56
      %p63 = scmp.eq.s32.totalorder %s25, 1
      %p64 = por %p62, %p63
      %p65 = scmp.ne.s32.totalorder %s56, %s57
      %p66 = scmp.eq.s32.totalorder %s25, 0
      %p67 = por %p65, %p66
      %p68 = scmp.ne.s32.totalorder %s56, %s57
      %p69 = scmp.eq.s32.totalorder %s26, 1
      %p70 = por %p68, %p69
      %p72 = scmp.ne.s32.totalorder %s57, %s71
      %p73 = scmp.eq.s32.totalorder %s26, 0
      %p74 = por %p72, %p73
      %s75 = ssub.s32 %s20, %s27
      %p76 = scmp.eq.s32.totalorder %s75, 0
      %s78 = sadd.s32 %s77, 1
      %s79 = scalar_select %p76, %s77, %s78
      %p82 = pneg %p76
      %p83 = scmp.eq.s32.totalorder %s20, 1
      %p84 = por %p82, %p83
      %p85 = scmp.ne.s32.totalorder %s77, %s80
      %p86 = scmp.eq.s32.totalorder %s20, 0
      %p87 = por %p85, %p86
      %p88 = scmp.ne.s32.totalorder %s77, %s80
      %p89 = scmp.eq.s32.totalorder %s25, 1
      %p90 = por %p88, %p89
      %p91 = scmp.ne.s32.totalorder %s80, %s81
      %p92 = scmp.eq.s32.totalorder %s25, 0
      %p93 = por %p91, %p92
      %p94 = scmp.ne.s32.totalorder %s80, %s81
      %p95 = scmp.eq.s32.totalorder %s26, 1
      %p96 = por %p94, %p95
      %p98 = scmp.ne.s32.totalorder %s81, %s97
      %p99 = scmp.eq.s32.totalorder %s26, 0
      %p100 = por %p98, %p99
      %s101 = ssub.s32 %s20, %s27
      %p102 = scmp.eq.s32.totalorder %s101, 0
      %s104 = sadd.s32 %s103, 1
      %s105 = scalar_select %p102, %s103, %s104
      %p108 = pneg %p102
      %p109 = scmp.eq.s32.totalorder %s20, 1
      %p110 = por %p108, %p109
      %p111 = scmp.ne.s32.totalorder %s103, %s106
      %p112 = scmp.eq.s32.totalorder %s20, 0
      %p113 = por %p111, %p112
      %p114 = scmp.ne.s32.totalorder %s103, %s106
      %p115 = scmp.eq.s32.totalorder %s25, 1
      %p116 = por %p114, %p115
      %p117 = scmp.ne.s32.totalorder %s106, %s107
      %p118 = scmp.eq.s32.totalorder %s25, 0
      %p119 = por %p117, %p118
      %p120 = scmp.ne.s32.totalorder %s106, %s107
      %p121 = scmp.eq.s32.totalorder %s26, 1
      %p122 = por %p120, %p121
      %p124 = scmp.ne.s32.totalorder %s107, %s123
      %p125 = scmp.eq.s32.totalorder %s26, 0
      %p126 = por %p124, %p125
      %p127 = scmp.le.s32.totalorder 1, %s20
      %p128 = scmp.lt.s32.totalorder %s20, 3
      %p129 = pnand %p127, %p128
      %p130 = pneg %p129
      // Predicated region
      $region9: #{tpu_custom_call.1} parent=5 // pred_check
        _
      $region10: #{tpu_custom_call.1} parent=5 // pred_check_branch
        %132 = sbr.rel (%p129) target = $region12
      $region11: #{tpu_custom_call.1} parent=5 // pred_region
        %s133 = ssub.s32 %s20, 1
        // Predicated region
        $region13: #{tpu_custom_call.1} parent=11 // pred_check
          %p134 = pneg %p67
        $region14: #{tpu_custom_call.1} parent=11 // pred_check_branch
          %136 = sbr.rel (%p134) target = $region16
        $region15: #{tpu_custom_call.1} parent=11 // pred_region
          %s138 = ssub.s32 6144, 6144
          %139 = vsyncadd [#allocation6], %s138
          %s140 = sshll.u32 [#allocation5], 4
          %s141 = int_to_ptr.vmem [resolvable:$true] %s140
          %146 = dma.hbm_to_vmem [thread:$0]  %s1, 6144, %s141, [#allocation6], 128, 128, 8
        $region16: #{tpu_custom_call.1} parent=11 // pred_fallthru
          _
      $region12: #{tpu_custom_call.1} parent=5 // pred_fallthru
        _
      %p147 = scmp.lt.s32.totalorder %s20, 2
      // Predicated region
      $region17: #{tpu_custom_call.1} parent=5 // pred_check
        %p148 = pneg %p147
      $region18: #{tpu_custom_call.1} parent=5 // pred_check_branch
        %150 = sbr.rel (%p148) target = $region20
      $region19: #{tpu_custom_call.1} parent=5 // pred_region
        // Predicated region
        $region21: #{tpu_custom_call.1} parent=19 // pred_check
          %p151 = pneg %p40
        $region22: #{tpu_custom_call.1} parent=19 // pred_check_branch
          %153 = sbr.rel (%p151) target = $region24
        $region23: #{tpu_custom_call.1} parent=19 // pred_region
          %s154 = sand.u32 %s30, 1
          %s155 = scalar_lea.sflag [#allocation3], %s154
          %s156 = sand.u32 %s30, 1
          %s157 = smul.addr %s156, 16
          %s158 = scalar_lea.vmem [#allocation2], %s157
          %s160 = ssub.s32 256, 256
          %161 = vsyncadd %s155, %s160
          %s162 = smul.addr %s20, 2
          %s163 = smul.addr %s162, 128
          %s164 = scalar_lea.hbm %s0, %s163
          %s165 = sshll.u32 %s158, 4
          %s166 = int_to_ptr.vmem [resolvable:$true] %s165
          %171 = dma.hbm_to_vmem [thread:$0]  %s164, 256, %s166, %s155, 128, 128, 8
        $region24: #{tpu_custom_call.1} parent=19 // pred_fallthru
          _
      $region20: #{tpu_custom_call.1} parent=5 // pred_fallthru
        _
      %p172 = scmp.le.s32.totalorder 1, %s20
      %p173 = scmp.lt.s32.totalorder %s20, 3
      %p174 = pnand %p172, %p173
      %p175 = pneg %p174
      // Predicated region
      $region25: #{tpu_custom_call.1} parent=5 // pred_check
        _
      $region26: #{tpu_custom_call.1} parent=5 // pred_check_branch
        %177 = sbr.rel (%p174) target = $region28
      $region27: #{tpu_custom_call.1} parent=5 // pred_region
        %s178 = ssub.s32 %s20, 1
        %s179 = sand.u32 %s33, 1
        %s180 = scalar_lea.sflag [#allocation3], %s179
        %s181 = sand.u32 %s33, 1
        %s182 = smul.addr %s181, 16
        %s183 = scalar_lea.vmem [#allocation2], %s182
        // Predicated region
        $region29: #{tpu_custom_call.1} parent=27 // pred_check
          %p184 = pneg %p46
        $region30: #{tpu_custom_call.1} parent=27 // pred_check_branch
          %186 = sbr.rel (%p184) target = $region32
        $region31: #{tpu_custom_call.1} parent=27 // pred_region
          %187 = dma.done %s180, 256
        $region32: #{tpu_custom_call.1} parent=27 // pred_fallthru
          _
        // Predicated region
        $region33: #{tpu_custom_call.1} parent=27 // pred_check
          %p188 = pneg %p67
        $region34: #{tpu_custom_call.1} parent=27 // pred_check_branch
          %190 = sbr.rel (%p188) target = $region36
        $region35: #{tpu_custom_call.1} parent=27 // pred_region
          %191 = dma.done [#allocation6], 6144
        $region36: #{tpu_custom_call.1} parent=27 // pred_fallthru
          _
        %s192 = sand.u32 %s33, 1
        %s193 = scalar_lea.sflag [#allocation3], %s192
        %s194 = sand.u32 %s33, 1
        %s195 = smul.addr %s194, 16
        %s196 = scalar_lea.vmem [#allocation2], %s195
        %p197 = pneg %p46
        %p198 = pneg %p43
        %p199 = pneg %p67
        %p200 = pneg %p64
        %p201 = pneg %p93
        %p202 = pneg %p90
        %s203 = sand.u32 %s80, 1
        %s204 = scalar_lea.sflag [#allocation4], %s203
        %s205 = sand.u32 %s80, 1
        %s206 = smul.addr %s205, 16
        %s207 = scalar_lea.vmem [#allocation7], %s206
        %p208 = pneg %p119
        %p209 = pneg %p116
        %s210 = sand.u32 %s106, 1
        %s211 = scalar_lea.sflag [#allocation9], %s210
        %s212 = sand.u32 %s106, 1
        %s213 = smul.addr %s212, 8
        %s214 = scalar_lea.vmem [#allocation8], %s213
        %v215 = vld [vmem:[%s183] sm:$0xff]
        %v216 = vld [vmem:[%s183 + $0x8] sm:$0xff]
        %v217 = vlaneseq
        %v218 = vshrl.u32 %v217, 7
        %v219 = vadd.s32 %v218, 8
        %vm220 = vcmp.lt.s32.totalorder %v218, 0
        %v221 = vsub.s32 0, %v218
        %v222 = vsel %vm220, %v221, %v218
        %v223 = vshrl.u32 %v222, 4
        %v224 = vand.u32 %v222, 15
        %v225 = vsub.s32 0, %v224
        %v226 = vsel %vm220, %v225, %v224
        %vm227 = vcmp.lt.s32.totalorder %v219, 0
        %v228 = vsub.s32 0, %v219
        %v229 = vsel %vm227, %v228, %v219
        %v230 = vshrl.u32 %v229, 4
        %v231 = vand.u32 %v229, 15
        %v232 = vsub.s32 0, %v231
        %v233 = vsel %vm227, %v232, %v231
        %vm234 = vcmp.ne.s32.totalorder %v226, 0
        %vm235 = vcmp.ne.s32.totalorder %v233, 0
        %vm236 = vcmp.lt.s32.totalorder %v226, 0
        %vm237 = vcmp.lt.s32.totalorder %v233, 0
        %vm238 = vmand %vm236, %vm234
        %vm239 = vmand %vm237, %vm235
        %v240 = vadd.s32 %v226, 16
        %v241 = vadd.s32 %v233, 16
        %v242 = vsel %vm238, %v240, %v226
        %v243 = vsel %vm239, %v241, %v233
        %v244 = vrot.slane %v215, 7
        %v245 = vrot.slane %v216, 7
        %vm246 = vcmp.lt.s32.totalorder %v218, 1
        %v247 = vsel %vm246, %v244, %v245
        %v248 = vsel %vm246, %v245, %v244
        %v249 = vadd.s32 %v242, 4294967295
        %v250 = vadd.s32 %v243, 4294967295
        %vm251 = vcmp.ge.s32.totalorder %v249, 0
        %vm252 = vcmp.ge.s32.totalorder %v250, 0
        %vm253 = vcmp.lt.s32.totalorder %v249, 16
        %vm254 = vcmp.lt.s32.totalorder %v250, 16
        %vm255 = vmand %vm251, %vm253
        %vm256 = vmand %vm252, %vm254
        %v257 = vsel %vm255, %v248, 0.0
        %v258 = vsel %vm256, %v247, 0.0
        %v259 = vrot.slane %v215, 1
        %v260 = vrot.slane %v216, 1
        %vm261 = vcmp.lt.s32.totalorder %v218, 7
        %v262 = vsel %vm261, %v259, %v260
        %v263 = vsel %vm261, %v260, %v259
        %v264 = vadd.s32 %v242, 1
        %v265 = vadd.s32 %v243, 1
        %vm266 = vcmp.ge.s32.totalorder %v264, 0
        %vm267 = vcmp.ge.s32.totalorder %v265, 0
        %vm268 = vcmp.lt.s32.totalorder %v264, 16
        %vm269 = vcmp.lt.s32.totalorder %v265, 16
        %vm270 = vmand %vm266, %vm268
        %vm271 = vmand %vm267, %vm269
        %v272 = vsel %vm270, %v262, 0.0
        %v273 = vsel %vm271, %v263, 0.0
        %v274 = vld [vmem:[#allocation5] sm:$0xff]
        %v275 = vld [vmem:[#allocation5 + $0x8] sm:$0xff]
        %v276 = vld [vmem:[#allocation5 + $0x10] sm:$0xff]
        %v277 = vld [vmem:[#allocation5 + $0x18] sm:$0xff]
        %v278 = vld [vmem:[#allocation5 + $0x20] sm:$0xff]
        %v279 = vld [vmem:[#allocation5 + $0x28] sm:$0xff]
        %v280 = vld [vmem:[#allocation5 + $0x30] sm:$0xff]
        %v281 = vld [vmem:[#allocation5 + $0x38] sm:$0xff]
        %v282 = vld [vmem:[#allocation5 + $0x40] sm:$0xff]
        %v283 = vld [vmem:[#allocation5 + $0x48] sm:$0xff]
        %v284 = vld [vmem:[#allocation5 + $0x50] sm:$0xff]
        %v285 = vld [vmem:[#allocation5 + $0x58] sm:$0xff]
        %v286 = vld [vmem:[#allocation5 + $0x60] sm:$0xff]
        %v287 = vld [vmem:[#allocation5 + $0x68] sm:$0xff]
        %v288 = vld [vmem:[#allocation5 + $0x70] sm:$0xff]
        %v289 = vld [vmem:[#allocation5 + $0x78] sm:$0xff]
        %v290 = vld [vmem:[#allocation5 + $0x80] sm:$0xff]
        %v291 = vld [vmem:[#allocation5 + $0x88] sm:$0xff]
        %v292 = vld [vmem:[#allocation5 + $0x90] sm:$0xff]
        %v293 = vld [vmem:[#allocation5 + $0x98] sm:$0xff]
        %v294 = vld [vmem:[#allocation5 + $0xa0] sm:$0xff]
        %v295 = vld [vmem:[#allocation5 + $0xa8] sm:$0xff]
        %v296 = vld [vmem:[#allocation5 + $0xb0] sm:$0xff]
        %v297 = vld [vmem:[#allocation5 + $0xb8] sm:$0xff]
        %v298 = vld [vmem:[#allocation5 + $0xc0] sm:$0xff]
        %v299 = vld [vmem:[#allocation5 + $0xc8] sm:$0xff]
        %v300 = vld [vmem:[#allocation5 + $0xd0] sm:$0xff]
        %v301 = vld [vmem:[#allocation5 + $0xd8] sm:$0xff]
        %v302 = vld [vmem:[#allocation5 + $0xe0] sm:$0xff]
        %v303 = vld [vmem:[#allocation5 + $0xe8] sm:$0xff]
        %v304 = vld [vmem:[#allocation5 + $0xf0] sm:$0xff]
        %v305 = vld [vmem:[#allocation5 + $0xf8] sm:$0xff]
        %v306 = vld [vmem:[#allocation5 + $0x100] sm:$0xff]
        %v307 = vld [vmem:[#allocation5 + $0x108] sm:$0xff]
        %v308 = vld [vmem:[#allocation5 + $0x110] sm:$0xff]
        %v309 = vld [vmem:[#allocation5 + $0x118] sm:$0xff]
        %v310 = vld [vmem:[#allocation5 + $0x120] sm:$0xff]
        %v311 = vld [vmem:[#allocation5 + $0x128] sm:$0xff]
        %v312 = vld [vmem:[#allocation5 + $0x130] sm:$0xff]
        %v313 = vld [vmem:[#allocation5 + $0x138] sm:$0xff]
        %v314 = vld [vmem:[#allocation5 + $0x140] sm:$0xff]
        %v315 = vld [vmem:[#allocation5 + $0x148] sm:$0xff]
        %v316 = vld [vmem:[#allocation5 + $0x150] sm:$0xff]
        %v317 = vld [vmem:[#allocation5 + $0x158] sm:$0xff]
        %v318 = vld [vmem:[#allocation5 + $0x160] sm:$0xff]
        %v319 = vld [vmem:[#allocation5 + $0x168] sm:$0xff]
        %v320 = vld [vmem:[#allocation5 + $0x170] sm:$0xff]
        %v321 = vld [vmem:[#allocation5 + $0x178] sm:$0xff]
        %322 = vmatprep.subr.mxu0 0.0
        %323 = vmatpush1.msra.mxu0 %v274
        %324 = vmatprep.subr.mxu0 0.0
        %325 = vmatpush1.msra.mxu0 %v275
        %326 = vmatprep.subr.mxu0 0.0
        %327 = vmatpush1.msra.mxu0 %v276
        %328 = vmatprep.subr.mxu0 0.0
        %329 = vmatpush1.msra.mxu0 %v277
        %330 = vmatprep.subr.mxu0 0.0
        %331 = vmatpush1.msra.mxu0 %v278
        %332 = vmatprep.subr.mxu0 0.0
        %333 = vmatpush1.msra.mxu0 %v279
        %334 = vmatprep.subr.mxu0 0.0
        %335 = vmatpush1.msra.mxu0 %v280
        %336 = vmatprep.subr.mxu0 0.0
        %337 = vmatpush1.msra.mxu0 %v281
        %338 = vmatprep.subr.mxu0 0.0
        %339 = vmatpush1.msra.mxu0 %v282
        %340 = vmatprep.subr.mxu0 0.0
        %341 = vmatpush1.msra.mxu0 %v283
        %342 = vmatprep.subr.mxu0 0.0
        %343 = vmatpush1.msra.mxu0 %v284
        %344 = vmatprep.subr.mxu0 0.0
        %345 = vmatpush1.msra.mxu0 %v285
        %346 = vmatprep.subr.mxu0 0.0
        %347 = vmatpush1.msra.mxu0 %v286
        %348 = vmatprep.subr.mxu0 0.0
        %349 = vmatpush1.msra.mxu0 %v287
        %350 = vmatprep.subr.mxu0 0.0
        %351 = vmatpush1.msra.mxu0 %v288
        %352 = vmatprep.subr.mxu0 0.0
        %353 = vmatpush1.msra.mxu0 %v289
        %354 = vmatprep.subr.mxu0 0.0
        %355 = vmatpush1.msra.mxu0 %v290
        %356 = vmatprep.subr.mxu0 0.0
        %357 = vmatpush1.msra.mxu0 %v291
        %358 = vmatprep.subr.mxu0 0.0
        %359 = vmatpush1.msra.mxu0 %v292
        %360 = vmatprep.subr.mxu0 0.0
        %361 = vmatpush1.msra.mxu0 %v293
        %362 = vmatprep.subr.mxu0 0.0
        %363 = vmatpush1.msra.mxu0 %v294
        %364 = vmatprep.subr.mxu0 0.0
        %365 = vmatpush1.msra.mxu0 %v295
        %366 = vmatprep.subr.mxu0 0.0
        %367 = vmatpush1.msra.mxu0 %v296
        %368 = vmatprep.subr.mxu0 0.0
        %369 = vmatpush1.msra.mxu0 %v297
        %370 = vmatprep.subr.mxu0 0.0
        %371 = vmatpush1.msra.mxu0 %v298
        %372 = vmatprep.subr.mxu0 0.0
        %373 = vmatpush1.msra.mxu0 %v299
        %374 = vmatprep.subr.mxu0 0.0
        %375 = vmatpush1.msra.mxu0 %v300
        %376 = vmatprep.subr.mxu0 0.0
        %377 = vmatpush1.msra.mxu0 %v301
        %378 = vmatprep.subr.mxu0 0.0
        %379 = vmatpush1.msra.mxu0 %v302
        %380 = vmatprep.subr.mxu0 0.0
        %381 = vmatpush1.msra.mxu0 %v303
        %382 = vmatprep.subr.mxu0 0.0
        %383 = vmatpush1.msra.mxu0 %v304
        %384 = vmatprep.subr.mxu0 0.0
        %385 = vmatpush1.msra.mxu0 %v305
        %386 = vmatprep.mubr.f32.mxu0 %v215
        %387 = vmatmul.mubr.f32.gmra.mrb[0].mxu0 %v257
        %v388 = vpop.f32.mrb[0].mxu0
        %v389 = vadd.f32 0.0, %v388
        %v390 = vpop.f32.mrb[0].mxu0
        %391 = vmatprep.mubr.f32.mxu0 %v216
        %392 = vmatmul.mubr.f32.gmra.mrb[0].mxu0 %v258
        %v393 = vpop.f32.mrb[0].mxu0
        %v394 = vadd.f32 0.0, %v393
        %v395 = vpop.f32.mrb[0].mxu0
        %396 = vdwg.mxu0
        %397 = vmatprep.subr.mxu0 0.0
        %398 = vmatpush1.msra.mxu0 %v306
        %399 = vmatprep.subr.mxu0 0.0
        %400 = vmatpush1.msra.mxu0 %v307
        %401 = vmatprep.subr.mxu0 0.0
        %402 = vmatpush1.msra.mxu0 %v308
        %403 = vmatprep.subr.mxu0 0.0
        %404 = vmatpush1.msra.mxu0 %v309
        %405 = vmatprep.subr.mxu0 0.0
        %406 = vmatpush1.msra.mxu0 %v310
        %407 = vmatprep.subr.mxu0 0.0
        %408 = vmatpush1.msra.mxu0 %v311
        %409 = vmatprep.subr.mxu0 0.0
        %410 = vmatpush1.msra.mxu0 %v312
        %411 = vmatprep.subr.mxu0 0.0
        %412 = vmatpush1.msra.mxu0 %v313
        %413 = vmatprep.subr.mxu0 0.0
        %414 = vmatpush1.msra.mxu0 %v314
        %415 = vmatprep.subr.mxu0 0.0
        %416 = vmatpush1.msra.mxu0 %v315
        %417 = vmatprep.subr.mxu0 0.0
        %418 = vmatpush1.msra.mxu0 %v316
        %419 = vmatprep.subr.mxu0 0.0
        %420 = vmatpush1.msra.mxu0 %v317
        %421 = vmatprep.subr.mxu0 0.0
        %422 = vmatpush1.msra.mxu0 %v318
        %423 = vmatprep.subr.mxu0 0.0
        %424 = vmatpush1.msra.mxu0 %v319
        %425 = vmatprep.subr.mxu0 0.0
        %426 = vmatpush1.msra.mxu0 %v320
        %427 = vmatprep.subr.mxu0 0.0
        %428 = vmatpush1.msra.mxu0 %v321
        %429 = vmatprep.subr.mxu0 0.0
        %430 = vmatpush1.msra.mxu0 0.0
        %431 = vmatprep.subr.mxu0 0.0
        %432 = vmatpush1.msra.mxu0 0.0
        %433 = vmatprep.subr.mxu0 0.0
        %434 = vmatpush1.msra.mxu0 0.0
        %435 = vmatprep.subr.mxu0 0.0
        %436 = vmatpush1.msra.mxu0 0.0
        %437 = vmatprep.subr.mxu0 0.0
        %438 = vmatpush1.msra.mxu0 0.0
        %439 = vmatprep.subr.mxu0 0.0
        %440 = vmatpush1.msra.mxu0 0.0
        %441 = vmatprep.subr.mxu0 0.0
        %442 = vmatpush1.msra.mxu0 0.0
        %443 = vmatprep.subr.mxu0 0.0
        %444 = vmatpush1.msra.mxu0 0.0
        %445 = vmatprep.subr.mxu0 0.0
        %446 = vmatpush1.msra.mxu0 0.0
        %447 = vmatprep.subr.mxu0 0.0
        %448 = vmatpush1.msra.mxu0 0.0
        %449 = vmatprep.subr.mxu0 0.0
        %450 = vmatpush1.msra.mxu0 0.0
        %451 = vmatprep.subr.mxu0 0.0
        %452 = vmatpush1.msra.mxu0 0.0
        %453 = vmatprep.subr.mxu0 0.0
        %454 = vmatpush1.msra.mxu0 0.0
        %455 = vmatprep.subr.mxu0 0.0
        %456 = vmatpush1.msra.mxu0 0.0
        %457 = vmatprep.subr.mxu0 0.0
        %458 = vmatpush1.msra.mxu0 0.0
        %459 = vmatprep.subr.mxu0 0.0
        %460 = vmatpush1.msra.mxu0 0.0
        %461 = vmatprep.mubr.f32.mxu0 0.0
        %462 = vmatmul.mubr.f32.gmra.mrb[0].mxu0 %v272
        %v463 = vpop.f32.mrb[0].mxu0
        %v464 = vadd.f32 %v389, %v463
        %v465 = vpop.f32.mrb[0].mxu0
        %466 = vmatprep.mubr.f32.mxu0 0.0
        %467 = vmatmul.mubr.f32.gmra.mrb[0].mxu0 %v273
        %v468 = vpop.f32.mrb[0].mxu0
        %v469 = vadd.f32 %v394, %v468
        %v470 = vpop.f32.mrb[0].mxu0
        %471 = vdwg.mxu0
        %472 = vst [vmem:[%s207] sm:$0xff] %v464
        %473 = vst [vmem:[%s207 + $0x8] sm:$0xff] %v469
        %v474 = vadd.f32 %v464, %v469
        %v475 = vrot.slane %v474, 4
        %v476 = vadd.f32 %v474, %v475
        %v477 = vrot.slane %v476, 2
        %v478 = vadd.f32 %v476, %v477
        %v479 = vrot.slane %v478, 1
        %v480 = vadd.f32 %v478, %v479
        %v481 = vmul.f32 %v480, 0.0625
        %v482 = vsub.f32 %v464, %v481
        %v483 = vsub.f32 %v469, %v481
        %v484 = vmul.f32 %v482, %v482
        %v485 = vmul.f32 %v483, %v483
        %v486 = vadd.f32 %v484, %v485
        %v487 = vrot.slane %v486, 4
        %v488 = vadd.f32 %v486, %v487
        %v489 = vrot.slane %v488, 2
        %v490 = vadd.f32 %v488, %v489
        %v491 = vrot.slane %v490, 1
        %v492 = vadd.f32 %v490, %v491
        %vm493 = vcmask 1040384
        %v494 = vsel %vm493, %v480, %v492
        %vm495 = vcmask 1041408
        %v496 = vsel %vm495, %v494, 0.0
        %497 = vst [vmem:[%s214] sm:$0xff] %v496
        %s498 = sand.u32 %s80, 1
        %s499 = scalar_lea.sflag [#allocation4], %s498
        %s500 = sand.u32 %s80, 1
        %s501 = smul.addr %s500, 16
        %s502 = scalar_lea.vmem [#allocation7], %s501
        %s503 = sand.u32 %s106, 1
        %s504 = scalar_lea.sflag [#allocation9], %s503
        %s505 = sand.u32 %s106, 1
        %s506 = smul.addr %s505, 8
        %s507 = scalar_lea.vmem [#allocation8], %s506
        // Predicated region
        $region37: #{tpu_custom_call.1} parent=27 // pred_check
          %p508 = pneg %p90
        $region38: #{tpu_custom_call.1} parent=27 // pred_check_branch
          %510 = sbr.rel (%p508) target = $region40
        $region39: #{tpu_custom_call.1} parent=27 // pred_region
          %s512 = ssub.s32 256, 256
          %513 = vsyncadd %s499, %s512
          %s514 = smul.addr %s25, 2
          %s515 = smul.addr %s514, 128
          %s516 = scalar_lea.hbm %s2, %s515
          %s517 = sshll.u32 %s502, 4
          %s518 = int_to_ptr.vmem [resolvable:$true] %s517
          %523 = dma.vmem_to_hbm [thread:$0]  %s518, 256, %s516, %s499, 128, 128, 8
        $region40: #{tpu_custom_call.1} parent=27 // pred_fallthru
          _
        // Predicated region
        $region41: #{tpu_custom_call.1} parent=27 // pred_check
          %p524 = pneg %p116
        $region42: #{tpu_custom_call.1} parent=27 // pred_check_branch
          %526 = sbr.rel (%p524) target = $region44
        $region43: #{tpu_custom_call.1} parent=27 // pred_region
          %s528 = ssub.s32 128, 128
          %529 = vsyncadd %s504, %s528
          %s530 = smul.addr %s25, 128
          %s531 = scalar_lea.hbm %s3, %s530
          %s533 = sshll.u32 %s507, 4
          %s534 = int_to_ptr.vmem [resolvable:$true] %s533
          %536 = dma.vmem_to_hbm [thread:$0]  %s534, 128, %s531, %s504
        $region44: #{tpu_custom_call.1} parent=27 // pred_fallthru
          _
      $region28: #{tpu_custom_call.1} parent=5 // pred_fallthru
        _
      %p537 = scmp.le.s32.totalorder 2, %s20
      // Predicated region
      $region45: #{tpu_custom_call.1} parent=5 // pred_check
        %p538 = pneg %p537
      $region46: #{tpu_custom_call.1} parent=5 // pred_check_branch
        %540 = sbr.rel (%p538) target = $region48
      $region47: #{tpu_custom_call.1} parent=5 // pred_region
        %s541 = ssub.s32 %s20, 2
        // Predicated region
        $region49: #{tpu_custom_call.1} parent=47 // pred_check
          %p542 = pneg %p96
        $region50: #{tpu_custom_call.1} parent=47 // pred_check_branch
          %544 = sbr.rel (%p542) target = $region52
        $region51: #{tpu_custom_call.1} parent=47 // pred_region
          %s545 = sand.u32 %s81, 1
          %s546 = scalar_lea.sflag [#allocation4], %s545
          %s547 = sand.u32 %s81, 1
          %s548 = smul.addr %s547, 16
          %s549 = scalar_lea.vmem [#allocation7], %s548
          %550 = dma.done %s546, 256
        $region52: #{tpu_custom_call.1} parent=47 // pred_fallthru
          _
        // Predicated region
        $region53: #{tpu_custom_call.1} parent=47 // pred_check
          %p551 = pneg %p122
        $region54: #{tpu_custom_call.1} parent=47 // pred_check_branch
          %553 = sbr.rel (%p551) target = $region56
        $region55: #{tpu_custom_call.1} parent=47 // pred_region
          %s554 = sand.u32 %s107, 1
          %s555 = scalar_lea.sflag [#allocation9], %s554
          %s556 = sand.u32 %s107, 1
          %s557 = smul.addr %s556, 8
          %s558 = scalar_lea.vmem [#allocation8], %s557
          %559 = dma.done %s555, 128
        $region56: #{tpu_custom_call.1} parent=47 // pred_fallthru
          _
      $region48: #{tpu_custom_call.1} parent=5 // pred_fallthru
        _
    $region6: #{tpu_custom_call.1} parent=1 // loop_footer
      %s24 = sadd.s32 1, %s20
    $region7: #{tpu_custom_call.1} parent=1 // loop_footer_branch
      %19 = sbr.rel target = $region3
    $region8: #{tpu_custom_call.1} parent=1 // loop_exit
      _
    %560 = vsyncpa [#allocation3], 1
    %s561 = scalar_lea.sflag [#allocation3], 1
    %562 = vsyncpa %s561, 1
    %563 = vsyncpa [#allocation6], 1
    %564 = vsyncpa [#allocation4], 1
    %s565 = scalar_lea.sflag [#allocation4], 1
    %566 = vsyncpa %s565, 1
    %567 = vsyncpa [#allocation9], 1
    %s568 = scalar_lea.sflag [#allocation9], 1
    %569 = vsyncpa %s568, 1

</llo_original>
